<compile_context>
chip_gen: v6e
topology: v6e:2x2x1
jax: 0.10.0
libtpu: 0.0.40
codegen_flags: <defaults>
</compile_context>

<pallas_src>
import functools

import jax
import jax.numpy as jnp
from jax.experimental import pallas as pl
from jax.experimental.pallas import tpu as pltpu


H_PAD = 128  # lane-dense width used for the hidden layers


def fc_classifier_kernel(x_ref, w1_ref, w2_ref, w3_ref, b_ref, out_ref):
    """Fused 3-layer MLP on one [tile_b, e_size] batch tile.

    x_ref : (tile_b, e_size)   native input dtype (cast to MXU dtype in-kernel)
    w1_ref: (e_size, 128)      MXU dtype (bf16 by default)
    w2_ref: (128, 128)         MXU dtype (hidden-64 zero-padded to 128)
    w3_ref: (128, n)           MXU dtype (rows zero-padded to 128)
    b_ref : (3, 128)  float32  stacked, zero-padded biases [b1; b2; b3]
    out_ref: (tile_b, n)       narrow output (no lane padding in HBM)
    """
    mxu_dtype = w1_ref.dtype
    n = out_ref.shape[-1]

    x = x_ref[...].astype(mxu_dtype)      # in-kernel cast: free under HBM roofline
    b = b_ref[...]                        # (3, 128) f32, resident across the grid

    # Layer 1: Linear(e_size, 128) + tanh   (f32 accumulate, f32 elementwise)
    h = jnp.dot(x, w1_ref[...], preferred_element_type=jnp.float32)
    h = jnp.tanh(h + b[0:1, :])

    # Layer 2: Linear(128, 64 -> 128 padded) + tanh
    h = jnp.dot(h.astype(mxu_dtype), w2_ref[...],
                preferred_element_type=jnp.float32)
    h = jnp.tanh(h + b[1:2, :])

    # Layer 3: Linear(64 -> 128 padded, n), no activation — narrow result
    h = jnp.dot(h.astype(mxu_dtype), w3_ref[...],
                preferred_element_type=jnp.float32)
    out_ref[...] = (h + b[2:3, :n]).astype(out_ref.dtype)


def _cdiv(a: int, m: int) -> int:
    return -(-a // m)


def _round_up(a: int, m: int) -> int:
    return _cdiv(a, m) * m


@functools.partial(jax.jit,
                   static_argnames=("tile_b", "compute_dtype", "out_dtype"))
def fc_classifier(x, params, *, tile_b: int = 4096,
                  compute_dtype=jnp.bfloat16, out_dtype=None):
    """x: [B, e_size].  params: dict with w1,b1,w2,b2,w3,b3.

    compute_dtype: dtype fed to the MXU dots (default bf16; None -> exact f32).
      Accumulation, bias-add and tanh always run in float32.
    out_dtype: output dtype (default: x.dtype).
    """
    B, e_size = x.shape
    out_dtype = x.dtype if out_dtype is None else out_dtype
    cdt = jnp.float32 if compute_dtype is None else compute_dtype

    w1, b1 = params["w1"], params["b1"]
    w2, b2 = params["w2"], params["b2"]
    w3, b3 = params["w3"], params["b3"]
    h1, h2, n = w1.shape[1], w2.shape[1], w3.shape[1]
    assert h1 <= H_PAD and h2 <= H_PAD, (
        "kernel assumes hidden sizes fit in a 128-lane padded block")

    # ---- lane-dense zero-padding of the small weights/biases (done once) ----
    w1p = jnp.pad(w1, ((0, 0), (0, H_PAD - h1))).astype(cdt)        # (e, 128)
    w2p = jnp.pad(w2, ((0, H_PAD - h1), (0, H_PAD - h2))).astype(cdt)  # (128,128)
    w3p = jnp.pad(w3, ((0, H_PAD - h2), (0, 0))).astype(cdt)        # (128, n)
    biases = jnp.stack([
        jnp.pad(b1.reshape(-1), (0, H_PAD - h1)).astype(jnp.float32),
        jnp.pad(b2.reshape(-1), (0, H_PAD - h2)).astype(jnp.float32),
        jnp.pad(b3.reshape(-1), (0, H_PAD - n)).astype(jnp.float32),
    ])                                                               # (3, 128)

    # ---- batch tiling: no padding/copy of x; ragged last block is masked ----
    if B <= 256:
        tile = _round_up(max(B, 8), 8)
    else:
        # >= 2 grid steps so both v7x TensorCores get work; 256-aligned rows.
        tile = min(tile_b, _round_up(_cdiv(B, 2), 256))
        tile = max(256, (tile // 256) * 256)
    grid = (_cdiv(B, tile),)

    resident = lambda shape: pl.BlockSpec(shape, lambda i: (0, 0))

    out = pl.pallas_call(
        fc_classifier_kernel,
        out_shape=jax.ShapeDtypeStruct((B, n), out_dtype),
        grid_spec=pl.GridSpec(
            grid=grid,
            in_specs=[
                pl.BlockSpec((tile, e_size), lambda i: (i, 0)),   # x tile
                resident((e_size, H_PAD)),                        # W1 (padded)
                resident((H_PAD, H_PAD)),                         # W2 (padded)
                resident((H_PAD, n)),                             # W3 (padded rows)
                resident((3, H_PAD)),                             # stacked biases
            ],
            out_specs=pl.BlockSpec((tile, n), lambda i: (i, 0)),
        ),
        compiler_params=pltpu.CompilerParams(
            dimension_semantics=("parallel",),
            vmem_limit_bytes=32 * 1024 * 1024),
    )(x, w1p, w2p, w3p, biases)

    return out


def init_params(key, e_size=128, n=10):
    """Deterministic synthetic parameters with the module's shapes."""
    ks = jax.random.split(key, 6)

    def lin(kw, kb, fan_in, fan_out):
        bound = 1.0 / jnp.sqrt(fan_in)
        w = jax.random.uniform(kw, (fan_in, fan_out), jnp.float32, -bound, bound)
        b = jax.random.uniform(kb, (fan_out,), jnp.float32, -bound, bound)
        return w, b

    w1, b1 = lin(ks[0], ks[1], e_size, 128)
    w2, b2 = lin(ks[2], ks[3], 128, 64)
    w3, b3 = lin(ks[4], ks[5], 64, n)
    return dict(w1=w1, b1=b1, w2=w2, b2=b2, w3=w3, b3=b3)


def fc_classifier_ref(x, p):
    h1 = jnp.tanh(x @ p["w1"] + p["b1"])
    h2 = jnp.tanh(h1 @ p["w2"] + p["b2"])
    return h2 @ p["w3"] + p["b3"]


if __name__ == "__main__":
    key = jax.random.PRNGKey(0)
    k_x, k_x2, k_p = jax.random.split(key, 3)

    e_size, n = 128, 10
    params = init_params(k_p, e_size=e_size, n=n)

    # Small batch (single tile)
    x = jax.random.normal(k_x, (8, e_size), jnp.float32)
    ref = fc_classifier_ref(x, params)

    # Exact f32-MXU path
    out_f32 = jax.block_until_ready(fc_classifier(x, params, compute_dtype=None))
    assert out_f32.shape == (8, n)
    assert jnp.allclose(out_f32, ref, atol=1e-5, rtol=1e-5), "f32 mismatch vs reference"

    # Default bf16-MXU path (f32 accumulation / bias / tanh)
    out_bf = jax.block_until_ready(fc_classifier(x, params))
    assert out_bf.shape == (8, n)
    assert jnp.allclose(out_bf, ref, atol=5e-2, rtol=5e-2), "bf16 mismatch vs reference"

    # Ragged multi-tile grid (B not a multiple of the tile): exercises the
    # clipped last block and the 2-step parallel grid, exactly in f32.
    x2 = jax.random.normal(k_x2, (300, e_size), jnp.float32)
    ref2 = fc_classifier_ref(x2, params)
    out2 = jax.block_until_ready(fc_classifier(x2, params, compute_dtype=None))
    assert out2.shape == (300, n)
    assert jnp.allclose(out2, ref2, atol=1e-5, rtol=1e-5), "ragged-grid mismatch"

    print("KERNEL_OK")
</pallas_src>

<mosaic_0001>
module attributes {stable_mosaic.version = 11 : i64} {
  func.func @fc_classifier_kernel(%arg0: i32, %arg1: memref<8x128xf32, #tpu.memory_space<vmem>>, %arg2: memref<128x128xf32, #tpu.memory_space<vmem>>, %arg3: memref<128x128xf32, #tpu.memory_space<vmem>>, %arg4: memref<128x10xf32, #tpu.memory_space<vmem>>, %arg5: memref<3x128xf32, #tpu.memory_space<vmem>>, %arg6: memref<8x10xf32, #tpu.memory_space<vmem>>) attributes {dimension_semantics = [#tpu.dimension_semantics<parallel>], iteration_bounds = array<i64: 1>, scalar_prefetch = 0 : i64, scratch_operands = 0 : i64, tpu.core_type = #tpu.core_type<tc>, window_params = [{transform_indices = @transform_0, window_bounds = array<i64: 8, 128>}, {pipeline_mode = #tpu.pipeline_mode<synchronous>, transform_indices = @transform_1, window_bounds = array<i64: 128, 128>}, {pipeline_mode = #tpu.pipeline_mode<synchronous>, transform_indices = @transform_2, window_bounds = array<i64: 128, 128>}, {pipeline_mode = #tpu.pipeline_mode<synchronous>, transform_indices = @transform_3, window_bounds = array<i64: 128, 10>}, {pipeline_mode = #tpu.pipeline_mode<synchronous>, transform_indices = @transform_4, window_bounds = array<i64: 3, 128>}, {transform_indices = @transform_5, window_bounds = array<i64: 8, 10>}]} {
    %c0 = arith.constant 0 : index
    %c0_0 = arith.constant 0 : index
    %0 = vector.load %arg1[%c0, %c0_0] : memref<8x128xf32, #tpu.memory_space<vmem>>, vector<8x128xf32>
    %c0_1 = arith.constant 0 : index
    %c0_2 = arith.constant 0 : index
    %1 = vector.load %arg5[%c0_1, %c0_2] : memref<3x128xf32, #tpu.memory_space<vmem>>, vector<3x128xf32>
    %c0_3 = arith.constant 0 : index
    %c0_4 = arith.constant 0 : index
    %2 = vector.load %arg2[%c0_3, %c0_4] : memref<128x128xf32, #tpu.memory_space<vmem>>, vector<128x128xf32>
    %cst = arith.constant dense<0.000000e+00> : vector<8x128xf32>
    %3 = tpu.matmul %0, %2, %cst {dimension_numbers = #tpu.dot_dimension_numbers<[1], [0], [0], [1], [0, 0, 1, 1], [], []>} : vector<8x128xf32>, vector<128x128xf32>, vector<8x128xf32> -> vector<8x128xf32>
    %4 = vector.extract_strided_slice %1 {offsets = [0, 0], sizes = [1, 128], strides = [1, 1]} : vector<3x128xf32> to vector<1x128xf32>
    %5 = vector.broadcast %4 : vector<1x128xf32> to vector<8x128xf32>
    %6 = arith.addf %3, %5 : vector<8x128xf32>
    %7 = math.tanh %6 : vector<8x128xf32>
    %c0_5 = arith.constant 0 : index
    %c0_6 = arith.constant 0 : index
    %8 = vector.load %arg3[%c0_5, %c0_6] : memref<128x128xf32, #tpu.memory_space<vmem>>, vector<128x128xf32>
    %cst_7 = arith.constant dense<0.000000e+00> : vector<8x128xf32>
    %9 = tpu.matmul %7, %8, %cst_7 {dimension_numbers = #tpu.dot_dimension_numbers<[1], [0], [0], [1], [0, 0, 1, 1], [], []>} : vector<8x128xf32>, vector<128x128xf32>, vector<8x128xf32> -> vector<8x128xf32>
    %10 = vector.extract_strided_slice %1 {offsets = [1, 0], sizes = [1, 128], strides = [1, 1]} : vector<3x128xf32> to vector<1x128xf32>
    %11 = vector.broadcast %10 : vector<1x128xf32> to vector<8x128xf32>
    %12 = arith.addf %9, %11 : vector<8x128xf32>
    %13 = math.tanh %12 : vector<8x128xf32>
    %c0_8 = arith.constant 0 : index
    %c0_9 = arith.constant 0 : index
    %14 = vector.load %arg4[%c0_8, %c0_9] : memref<128x10xf32, #tpu.memory_space<vmem>>, vector<128x10xf32>
    %cst_10 = arith.constant dense<0.000000e+00> : vector<8x10xf32>
    %15 = tpu.matmul %13, %14, %cst_10 {dimension_numbers = #tpu.dot_dimension_numbers<[1], [0], [0], [1], [0, 0, 1, 1], [], []>} : vector<8x128xf32>, vector<128x10xf32>, vector<8x10xf32> -> vector<8x10xf32>
    %16 = vector.extract_strided_slice %1 {offsets = [2, 0], sizes = [1, 10], strides = [1, 1]} : vector<3x128xf32> to vector<1x10xf32>
    %17 = vector.broadcast %16 : vector<1x10xf32> to vector<8x10xf32>
    %18 = arith.addf %15, %17 : vector<8x10xf32>
    %c0_11 = arith.constant 0 : index
    %c0_12 = arith.constant 0 : index
    %19 = vector.load %arg6[%c0_11, %c0_12] : memref<8x10xf32, #tpu.memory_space<vmem>>, vector<8x10xf32>
    tpu.vector_store %arg6[%c0_11, %c0_12], %18 {strides = array<i32>} : memref<8x10xf32, #tpu.memory_space<vmem>>, vector<8x10xf32>,
    return
  }
  func.func @transform_0(%arg0: i32) -> (i32, i32) {
    %c0_i32 = arith.constant 0 : i32
    %c0_i32_0 = arith.constant 0 : i32
    return %arg0, %c0_i32 : i32, i32
  }
  func.func @transform_1(%arg0: i32) -> (i32, i32) {
    %c0_i32 = arith.constant 0 : i32
    %c0_i32_0 = arith.constant 0 : i32
    %c0_i32_1 = arith.constant 0 : i32
    return %c0_i32, %c0_i32_0 : i32, i32
  }
  func.func @transform_2(%arg0: i32) -> (i32, i32) {
    %c0_i32 = arith.constant 0 : i32
    %c0_i32_0 = arith.constant 0 : i32
    %c0_i32_1 = arith.constant 0 : i32
    return %c0_i32, %c0_i32_0 : i32, i32
  }
  func.func @transform_3(%arg0: i32) -> (i32, i32) {
    %c0_i32 = arith.constant 0 : i32
    %c0_i32_0 = arith.constant 0 : i32
    %c0_i32_1 = arith.constant 0 : i32
    return %c0_i32, %c0_i32_0 : i32, i32
  }
  func.func @transform_4(%arg0: i32) -> (i32, i32) {
    %c0_i32 = arith.constant 0 : i32
    %c0_i32_0 = arith.constant 0 : i32
    %c0_i32_1 = arith.constant 0 : i32
    return %c0_i32, %c0_i32_0 : i32, i32
  }
  func.func @transform_5(%arg0: i32) -> (i32, i32) {
    %c0_i32 = arith.constant 0 : i32
    %c0_i32_0 = arith.constant 0 : i32
    return %arg0, %c0_i32 : i32, i32
  }
}

</mosaic_0001>

<llo_original>
// kernel: fc_classifier.1
$region0: #{fc_classifier.1}
  #allocation0 [shape = 'u32[]', space=smem, size = 0x4, offset = 0x4, fixed_abs, tag = 'smem constant byte address 0x4 - core index']
  #allocation1 [shape = 'u32[144,128]{1,0:T(1,128)}', space=vmem, size = 0x12000, scoped, tag = 'internal scratch']
  %s0 = inlined_call_operand.vmem [shape: f32[8,128], index: 0, kind: input, shape index: {}]
  %s1 = inlined_call_operand.vmem [shape: f32[128,128], index: 1, kind: input, shape index: {}]
  %s2 = inlined_call_operand.vmem [shape: f32[128,128], index: 2, kind: input, shape index: {}]
  %s3 = inlined_call_operand.vmem [shape: f32[128,10], index: 3, kind: input, shape index: {}]
  %s4 = inlined_call_operand.vmem [shape: f32[3,128], index: 4, kind: input, shape index: {}]
  %s5 = inlined_call_operand.hbm [shape: f32[8,10], index: 5, kind: output, shape index: {}]
  %s6 = sld [smem:[#allocation0]]
  $region30: #{fc_classifier.1} parent=0
    _
  %s8 = ssub.s32 1, %s6
  %s9 = scalar_select 0, %s8, %s6
  $region1: #{fc_classifier.1} parent=0
    #allocation2 [shape = 'u8[4096]{0}', space=vmem, size = 0x1000, scoped, tag = 'output window, operand 0, single buffered']
    #allocation3 [shape = 's32[1]{0}', space=sflag, size = 0x4, scoped, tag = 'scoped memory for fc_classifier.1']
    %10 = vsyncpa [#allocation3], 0
    // Predicated region
    $region2: #{fc_classifier.1} parent=1 // pred_check
      _
    $region3: #{fc_classifier.1} parent=1 // pred_check_branch
      %12 = sbr.rel (0) target = $region5
    $region4: #{fc_classifier.1} parent=1 // pred_region
      _
    $region5: #{fc_classifier.1} parent=1 // pred_fallthru
      _
    // Predicated region
    $region6: #{fc_classifier.1} parent=1 // pred_check
      _
    $region7: #{fc_classifier.1} parent=1 // pred_check_branch
      %14 = sbr.rel (0) target = $region9
    $region8: #{fc_classifier.1} parent=1 // pred_region
      _
    $region9: #{fc_classifier.1} parent=1 // pred_fallthru
      _
    // Predicated region
    $region10: #{fc_classifier.1} parent=1 // pred_check
      _
    $region11: #{fc_classifier.1} parent=1 // pred_check_branch
      %16 = sbr.rel (0) target = $region13
    $region12: #{fc_classifier.1} parent=1 // pred_region
      _
    $region13: #{fc_classifier.1} parent=1 // pred_fallthru
      _
    // Predicated region
    $region14: #{fc_classifier.1} parent=1 // pred_check
      _
    $region15: #{fc_classifier.1} parent=1 // pred_check_branch
      %18 = sbr.rel (0) target = $region17
    $region16: #{fc_classifier.1} parent=1 // pred_region
      _
    $region17: #{fc_classifier.1} parent=1 // pred_fallthru
      _
    // Predicated region
    $region18: #{fc_classifier.1} parent=1 // pred_check
      _
    $region19: #{fc_classifier.1} parent=1 // pred_check_branch
      %20 = sbr.rel (0) target = $region21
    $region20: #{fc_classifier.1} parent=1 // pred_region
      _
    $region21: #{fc_classifier.1} parent=1 // pred_fallthru
      _
    %v21 = vld [vmem:[%s0] sm:$0xff]
    %v22 = vld [vmem:[%s4] sm:$0x7]
    %v23 = vld [vmem:[%s1] sm:$0xff]
    %v24 = vld [vmem:[%s1 + $0x8] sm:$0xff]
    %v25 = vld [vmem:[%s1 + $0x10] sm:$0xff]
    %v26 = vld [vmem:[%s1 + $0x18] sm:$0xff]
    %v27 = vld [vmem:[%s1 + $0x20] sm:$0xff]
    %v28 = vld [vmem:[%s1 + $0x28] sm:$0xff]
    %v29 = vld [vmem:[%s1 + $0x30] sm:$0xff]
    %v30 = vld [vmem:[%s1 + $0x38] sm:$0xff]
    %v31 = vld [vmem:[%s1 + $0x40] sm:$0xff]
    %v32 = vld [vmem:[%s1 + $0x48] sm:$0xff]
    %v33 = vld [vmem:[%s1 + $0x50] sm:$0xff]
    %v34 = vld [vmem:[%s1 + $0x58] sm:$0xff]
    %v35 = vld [vmem:[%s1 + $0x60] sm:$0xff]
    %v36 = vld [vmem:[%s1 + $0x68] sm:$0xff]
    %v37 = vld [vmem:[%s1 + $0x70] sm:$0xff]
    %v38 = vld [vmem:[%s1 + $0x78] sm:$0xff]
    %v39 = vlaneseq
    %v40 = vshrl.u32 %v39, 7
    %v41 = vsub.s32 0, %v40
    %v42 = vrot.slane %v22, %v41
    %43 = vmatprep.subr.mxu0 0.0
    %44 = vmatpush1.msra.mxu0 %v38
    %45 = vmatprep.subr.mxu0 0.0
    %46 = vmatpush1.msra.mxu0 %v37
    %47 = vmatprep.subr.mxu0 0.0
    %48 = vmatpush1.msra.mxu0 %v36
    %49 = vmatprep.subr.mxu0 0.0
    %50 = vmatpush1.msra.mxu0 %v35
    %51 = vmatprep.subr.mxu0 0.0
    %52 = vmatpush1.msra.mxu0 %v34
    %53 = vmatprep.subr.mxu0 0.0
    %54 = vmatpush1.msra.mxu0 %v33
    %55 = vmatprep.subr.mxu0 0.0
    %56 = vmatpush1.msra.mxu0 %v32
    %57 = vmatprep.subr.mxu0 0.0
    %58 = vmatpush1.msra.mxu0 %v31
    %59 = vmatprep.subr.mxu0 0.0
    %60 = vmatpush1.msra.mxu0 %v30
    %61 = vmatprep.subr.mxu0 0.0
    %62 = vmatpush1.msra.mxu0 %v29
    %63 = vmatprep.subr.mxu0 0.0
    %64 = vmatpush1.msra.mxu0 %v28
    %65 = vmatprep.subr.mxu0 0.0
    %66 = vmatpush1.msra.mxu0 %v27
    %67 = vmatprep.subr.mxu0 0.0
    %68 = vmatpush1.msra.mxu0 %v26
    %69 = vmatprep.subr.mxu0 0.0
    %70 = vmatpush1.msra.mxu0 %v25
    %71 = vmatprep.subr.mxu0 0.0
    %72 = vmatpush1.msra.mxu0 %v24
    %73 = vmatprep.subr.mxu0 0.0
    %74 = vmatpush1.msra.mxu0 %v23
    %75 = vmatprep.subr.mxu0 0.0
    %76 = vmatpush2.msra.mxu0 0.0
    %77 = vmatprep.subr.mxu0 0.0
    %78 = vmatpush2.msra.mxu0 0.0
    %79 = vmatprep.subr.mxu0 0.0
    %80 = vmatpush2.msra.mxu0 0.0
    %81 = vmatprep.subr.mxu0 0.0
    %82 = vmatpush2.msra.mxu0 0.0
    %83 = vmatprep.subr.mxu0 0.0
    %84 = vmatpush2.msra.mxu0 0.0
    %85 = vmatprep.subr.mxu0 0.0
    %86 = vmatpush2.msra.mxu0 0.0
    %87 = vmatprep.subr.mxu0 0.0
    %88 = vmatpush2.msra.mxu0 0.0
    %89 = vmatprep.subr.mxu0 0.0
    %90 = vmatpush2.msra.mxu0 0.0
    %91 = vmatprep.subr.mxu0 0.0
    %92 = vmatpush2.msra.mxu0 0.0
    %93 = vmatprep.subr.mxu0 0.0
    %94 = vmatpush2.msra.mxu0 0.0
    %95 = vmatprep.subr.mxu0 0.0
    %96 = vmatpush2.msra.mxu0 0.0
    %97 = vmatprep.subr.mxu0 0.0
    %98 = vmatpush2.msra.mxu0 0.0
    %99 = vmatprep.subr.mxu0 0.0
    %100 = vmatpush2.msra.mxu0 0.0
    %101 = vmatprep.subr.mxu0 0.0
    %102 = vmatpush2.msra.mxu0 0.0
    %103 = vmatprep.subr.mxu0 0.0
    %104 = vmatpush2.msra.mxu0 0.0
    %105 = vmatprep.subr.mxu0 0.0
    %106 = vmatpush2.msra.mxu0 0.0
    %107 = vmatprep.mubr.f32.mxu0 0.0
    %108 = vmatmul.mubr.f32.gmra.mxu0 %v21
    %v109 = vpop.f32.mrf.mxu0
    %v110 = vadd.f32 %v42, %v109
    %v111 = vpop.f32.mrf.mxu0
    %112 = vdwg.mxu0
    %v113 = vtanh.pop %v110
    %v114 = vld [vmem:[%s2] sm:$0xff]
    %v115 = vld [vmem:[%s2 + $0x8] sm:$0xff]
    %v116 = vld [vmem:[%s2 + $0x10] sm:$0xff]
    %v117 = vld [vmem:[%s2 + $0x18] sm:$0xff]
    %v118 = vld [vmem:[%s2 + $0x20] sm:$0xff]
    %v119 = vld [vmem:[%s2 + $0x28] sm:$0xff]
    %v120 = vld [vmem:[%s2 + $0x30] sm:$0xff]
    %v121 = vld [vmem:[%s2 + $0x38] sm:$0xff]
    %v122 = vld [vmem:[%s2 + $0x40] sm:$0xff]
    %v123 = vld [vmem:[%s2 + $0x48] sm:$0xff]
    %v124 = vld [vmem:[%s2 + $0x50] sm:$0xff]
    %v125 = vld [vmem:[%s2 + $0x58] sm:$0xff]
    %v126 = vld [vmem:[%s2 + $0x60] sm:$0xff]
    %v127 = vld [vmem:[%s2 + $0x68] sm:$0xff]
    %v128 = vld [vmem:[%s2 + $0x70] sm:$0xff]
    %v129 = vld [vmem:[%s2 + $0x78] sm:$0xff]
    %v130 = vlaneseq
    %v131 = vshrl.u32 %v130, 7
    %v132 = vsub.s32 1, %v131
    %v133 = vrot.slane %v22, %v132
    %134 = vmatprep.subr.mxu0 0.0
    %135 = vmatpush1.msra.mxu0 %v129
    %136 = vmatprep.subr.mxu0 0.0
    %137 = vmatpush1.msra.mxu0 %v128
    %138 = vmatprep.subr.mxu0 0.0
    %139 = vmatpush1.msra.mxu0 %v127
    %140 = vmatprep.subr.mxu0 0.0
    %141 = vmatpush1.msra.mxu0 %v126
    %142 = vmatprep.subr.mxu0 0.0
    %143 = vmatpush1.msra.mxu0 %v125
    %144 = vmatprep.subr.mxu0 0.0
    %145 = vmatpush1.msra.mxu0 %v124
    %146 = vmatprep.subr.mxu0 0.0
    %147 = vmatpush1.msra.mxu0 %v123
    %148 = vmatprep.subr.mxu0 0.0
    %149 = vmatpush1.msra.mxu0 %v122
    %150 = vmatprep.subr.mxu0 0.0
    %151 = vmatpush1.msra.mxu0 %v121
    %152 = vmatprep.subr.mxu0 0.0
    %153 = vmatpush1.msra.mxu0 %v120
    %154 = vmatprep.subr.mxu0 0.0
    %155 = vmatpush1.msra.mxu0 %v119
    %156 = vmatprep.subr.mxu0 0.0
    %157 = vmatpush1.msra.mxu0 %v118
    %158 = vmatprep.subr.mxu0 0.0
    %159 = vmatpush1.msra.mxu0 %v117
    %160 = vmatprep.subr.mxu0 0.0
    %161 = vmatpush1.msra.mxu0 %v116
    %162 = vmatprep.subr.mxu0 0.0
    %163 = vmatpush1.msra.mxu0 %v115
    %164 = vmatprep.subr.mxu0 0.0
    %165 = vmatpush1.msra.mxu0 %v114
    %166 = vmatprep.subr.mxu0 0.0
    %167 = vmatpush2.msra.mxu0 0.0
    %168 = vmatprep.subr.mxu0 0.0
    %169 = vmatpush2.msra.mxu0 0.0
    %170 = vmatprep.subr.mxu0 0.0
    %171 = vmatpush2.msra.mxu0 0.0
    %172 = vmatprep.subr.mxu0 0.0
    %173 = vmatpush2.msra.mxu0 0.0
    %174 = vmatprep.subr.mxu0 0.0
    %175 = vmatpush2.msra.mxu0 0.0
    %176 = vmatprep.subr.mxu0 0.0
    %177 = vmatpush2.msra.mxu0 0.0
    %178 = vmatprep.subr.mxu0 0.0
    %179 = vmatpush2.msra.mxu0 0.0
    %180 = vmatprep.subr.mxu0 0.0
    %181 = vmatpush2.msra.mxu0 0.0
    %182 = vmatprep.subr.mxu0 0.0
    %183 = vmatpush2.msra.mxu0 0.0
    %184 = vmatprep.subr.mxu0 0.0
    %185 = vmatpush2.msra.mxu0 0.0
    %186 = vmatprep.subr.mxu0 0.0
    %187 = vmatpush2.msra.mxu0 0.0
    %188 = vmatprep.subr.mxu0 0.0
    %189 = vmatpush2.msra.mxu0 0.0
    %190 = vmatprep.subr.mxu0 0.0
    %191 = vmatpush2.msra.mxu0 0.0
    %192 = vmatprep.subr.mxu0 0.0
    %193 = vmatpush2.msra.mxu0 0.0
    %194 = vmatprep.subr.mxu0 0.0
    %195 = vmatpush2.msra.mxu0 0.0
    %196 = vmatprep.subr.mxu0 0.0
    %197 = vmatpush2.msra.mxu0 0.0
    %198 = vmatprep.mubr.f32.mxu0 0.0
    %199 = vmatmul.mubr.f32.gmra.mxu0 %v113
    %v200 = vpop.f32.mrf.mxu0
    %v201 = vadd.f32 %v133, %v200
    %v202 = vpop.f32.mrf.mxu0
    %203 = vdwg.mxu0
    %v204 = vtanh.pop %v201
    %v205 = vld [vmem:[%s3] sm:$0xff]
    %v206 = vld [vmem:[%s3 + $0x8] sm:$0xff]
    %v207 = vld [vmem:[%s3 + $0x10] sm:$0xff]
    %v208 = vld [vmem:[%s3 + $0x18] sm:$0xff]
    %v209 = vld [vmem:[%s3 + $0x20] sm:$0xff]
    %v210 = vld [vmem:[%s3 + $0x28] sm:$0xff]
    %v211 = vld [vmem:[%s3 + $0x30] sm:$0xff]
    %v212 = vld [vmem:[%s3 + $0x38] sm:$0xff]
    %v213 = vld [vmem:[%s3 + $0x40] sm:$0xff]
    %v214 = vld [vmem:[%s3 + $0x48] sm:$0xff]
    %v215 = vld [vmem:[%s3 + $0x50] sm:$0xff]
    %v216 = vld [vmem:[%s3 + $0x58] sm:$0xff]
    %v217 = vld [vmem:[%s3 + $0x60] sm:$0xff]
    %v218 = vld [vmem:[%s3 + $0x68] sm:$0xff]
    %v219 = vld [vmem:[%s3 + $0x70] sm:$0xff]
    %v220 = vld [vmem:[%s3 + $0x78] sm:$0xff]
    %v221 = vlaneseq
    %v222 = vshrl.u32 %v221, 7
    %v223 = vsub.s32 2, %v222
    %v224 = vrot.slane %v22, %v223
    %225 = vmatprep.subr.mxu0 0.0
    %226 = vmatpush1.msra.mxu0 %v220
    %227 = vmatprep.subr.mxu0 0.0
    %228 = vmatpush1.msra.mxu0 %v219
    %229 = vmatprep.subr.mxu0 0.0
    %230 = vmatpush1.msra.mxu0 %v218
    %231 = vmatprep.subr.mxu0 0.0
    %232 = vmatpush1.msra.mxu0 %v217
    %233 = vmatprep.subr.mxu0 0.0
    %234 = vmatpush1.msra.mxu0 %v216
    %235 = vmatprep.subr.mxu0 0.0
    %236 = vmatpush1.msra.mxu0 %v215
    %237 = vmatprep.subr.mxu0 0.0
    %238 = vmatpush1.msra.mxu0 %v214
    %239 = vmatprep.subr.mxu0 0.0
    %240 = vmatpush1.msra.mxu0 %v213
    %241 = vmatprep.subr.mxu0 0.0
    %242 = vmatpush1.msra.mxu0 %v212
    %243 = vmatprep.subr.mxu0 0.0
    %244 = vmatpush1.msra.mxu0 %v211
    %245 = vmatprep.subr.mxu0 0.0
    %246 = vmatpush1.msra.mxu0 %v210
    %247 = vmatprep.subr.mxu0 0.0
    %248 = vmatpush1.msra.mxu0 %v209
    %249 = vmatprep.subr.mxu0 0.0
    %250 = vmatpush1.msra.mxu0 %v208
    %251 = vmatprep.subr.mxu0 0.0
    %252 = vmatpush1.msra.mxu0 %v207
    %253 = vmatprep.subr.mxu0 0.0
    %254 = vmatpush1.msra.mxu0 %v206
    %255 = vmatprep.subr.mxu0 0.0
    %256 = vmatpush1.msra.mxu0 %v205
    %257 = vmatprep.subr.mxu0 0.0
    %258 = vmatpush2.msra.mxu0 0.0
    %259 = vmatprep.subr.mxu0 0.0
    %260 = vmatpush2.msra.mxu0 0.0
    %261 = vmatprep.subr.mxu0 0.0
    %262 = vmatpush2.msra.mxu0 0.0
    %263 = vmatprep.subr.mxu0 0.0
    %264 = vmatpush2.msra.mxu0 0.0
    %265 = vmatprep.subr.mxu0 0.0
    %266 = vmatpush2.msra.mxu0 0.0
    %267 = vmatprep.subr.mxu0 0.0
    %268 = vmatpush2.msra.mxu0 0.0
    %269 = vmatprep.subr.mxu0 0.0
    %270 = vmatpush2.msra.mxu0 0.0
    %271 = vmatprep.subr.mxu0 0.0
    %272 = vmatpush2.msra.mxu0 0.0
    %273 = vmatprep.subr.mxu0 0.0
    %274 = vmatpush2.msra.mxu0 0.0
    %275 = vmatprep.subr.mxu0 0.0
    %276 = vmatpush2.msra.mxu0 0.0
    %277 = vmatprep.subr.mxu0 0.0
    %278 = vmatpush2.msra.mxu0 0.0
    %279 = vmatprep.subr.mxu0 0.0
    %280 = vmatpush2.msra.mxu0 0.0
    %281 = vmatprep.subr.mxu0 0.0
    %282 = vmatpush2.msra.mxu0 0.0
    %283 = vmatprep.subr.mxu0 0.0
    %284 = vmatpush2.msra.mxu0 0.0
    %285 = vmatprep.subr.mxu0 0.0
    %286 = vmatpush2.msra.mxu0 0.0
    %287 = vmatprep.subr.mxu0 0.0
    %288 = vmatpush2.msra.mxu0 0.0
    %289 = vmatprep.mubr.f32.mxu0 0.0
    %290 = vmatmul.mubr.f32.gmra.mxu0 %v204
    %v291 = vpop.f32.mrf.mxu0
    %v292 = vadd.f32 %v224, %v291
    %v293 = vpop.f32.mrf.mxu0
    %294 = vdwg.mxu0
    %vm295 = vcmask 80896
    %296 = vst.msk [vmem:[#allocation2] sm:$0xff] %vm295, %v292
    // Predicated region
    $region22: #{fc_classifier.1} parent=1 // pred_check
      _
    $region23: #{fc_classifier.1} parent=1 // pred_check_branch
      %298 = sbr.rel (0) target = $region25
    $region24: #{fc_classifier.1} parent=1 // pred_region
      %s300 = ssub.s32 128, 128
      %301 = vsyncadd [#allocation3], %s300
      %s303 = sshll.u32 [#allocation2], 4
      %s304 = int_to_ptr.vmem [resolvable:$true] %s303
      %306 = dma.vmem_to_hbm [thread:$0]  %s304, 128, %s5, [#allocation3]
    $region25: #{fc_classifier.1} parent=1 // pred_fallthru
      _
    // Predicated region
    $region26: #{fc_classifier.1} parent=1 // pred_check
      _
    $region27: #{fc_classifier.1} parent=1 // pred_check_branch
      %308 = sbr.rel (0) target = $region29
    $region28: #{fc_classifier.1} parent=1 // pred_region
      %309 = dma.done [#allocation3], 128
    $region29: #{fc_classifier.1} parent=1 // pred_fallthru
      _
    %310 = vsyncpa [#allocation3], 1

</llo_original>
